<compile_context>
chip_gen: v6e
topology: v6e:2x2x1
jax: 0.10.0
libtpu: 0.0.40
codegen_flags: <defaults>
</compile_context>

<pallas_src>
import jax
import jax.numpy as jnp
from jax.experimental import pallas as pl
from jax.experimental.pallas import tpu as pltpu

LANE = 128      # samples-per-lane tile granularity (lane width)
SUBLANE = 8     # feature dims padded to a multiple of this (sublane height)
MAX_TILE_N = 2048  # max samples per grid step (keeps per-step VMEM small, grid long)


def _round_up(n, m):
    return ((n + m - 1) // m) * m


def mlp_kernel(x_ref, y_ref, w1_ref, b1_ref, w2_ref, b2_ref, w3_ref, b3_ref, o_ref):
    # x_ref/y_ref: (1, TILE_N)   w1: (Hp, 2)   b*: (Hp|Op, 1)   w2: (Hp, Hp)   w3: (Op, Hp)
    # fc1 on the VPU: K=2 contraction as two lane-broadcast FMAs over the (Hp, TILE_N) tile.
    h = (w1_ref[:, 0:1] * x_ref[...]
         + w1_ref[:, 1:2] * y_ref[...]
         + b1_ref[...])                                          # (Hp, TILE_N)
    h = jnp.maximum(h, 0.0)                                      # relu
    # fc2 / fc3 on the MXU (weights stationary, samples stream on lanes).
    h = jnp.dot(w2_ref[...], h, preferred_element_type=jnp.float32) + b2_ref[...]
    h = jnp.maximum(h, 0.0)                                      # relu
    out = jnp.dot(w3_ref[...], h, preferred_element_type=jnp.float32) + b3_ref[...]
    o_ref[...] = out.astype(o_ref.dtype)                         # lane-dense (Op, TILE_N)


def prepare_params(params):
    """One-time prep: keep PyTorch (out, in) weight layout (no transpose needed for the
    transposed dataflow) and zero-pad feature dims to sublane multiples. Padding is
    mathematically exact (padded units get zero weight + zero bias -> relu(0)=0 -> 0)."""
    w1 = params["w1"]              # (hidden, in)
    w2 = params["w2"]              # (hidden, hidden)
    w3 = params["w3"]              # (out, hidden)
    hidden, in_f = w1.shape
    out_f = w3.shape[0]
    assert in_f == 2, "MLP.forward concatenates exactly two columns; input_size must be 2"
    Hp = max(SUBLANE, _round_up(hidden, SUBLANE))
    Op = max(SUBLANE, _round_up(out_f, SUBLANE))

    def pad2(a, r, c):
        return jnp.pad(a, ((0, r - a.shape[0]), (0, c - a.shape[1])))

    return {
        "in_f": in_f, "hidden_p": Hp, "out_f": out_f, "out_p": Op,
        "w1": pad2(w1, Hp, in_f),                                # (Hp, 2)
        "b1": pad2(params["b1"].reshape(-1, 1), Hp, 1),          # (Hp, 1)
        "w2": pad2(w2, Hp, Hp),                                  # (Hp, Hp)
        "b2": pad2(params["b2"].reshape(-1, 1), Hp, 1),          # (Hp, 1)
        "w3": pad2(w3, Op, Hp),                                  # (Op, Hp)
        "b3": pad2(params["b3"].reshape(-1, 1), Op, 1),          # (Op, 1)
    }


def mlp_forward(x, y, prep):
    """x, y: arbitrary shapes (flattened, as in the PyTorch module).
    prep: output of prepare_params. Returns (N, output_size)."""
    xr = x.reshape(1, -1).astype(jnp.float32)                    # (1, N) samples on lanes
    yr = y.reshape(1, -1).astype(jnp.float32)
    N = xr.shape[1]
    Hp, Op, out_f, in_f = prep["hidden_p"], prep["out_p"], prep["out_f"], prep["in_f"]

    # Bounded lane tile: small N -> single step; large N -> many pipelined "parallel"
    # steps with constant per-step VMEM footprint (both v7x TensorCores get work).
    tile_n = min(MAX_TILE_N, _round_up(N, LANE))
    num_tiles = pl.cdiv(N, tile_n)
    n_pad = num_tiles * tile_n
    if n_pad != N:
        xr = jnp.pad(xr, ((0, 0), (0, n_pad - N)))               # zero lanes, sliced later
        yr = jnp.pad(yr, ((0, 0), (0, n_pad - N)))

    out = pl.pallas_call(
        mlp_kernel,
        out_shape=jax.ShapeDtypeStruct((Op, n_pad), jnp.float32),
        grid_spec=pltpu.PrefetchScalarGridSpec(
            num_scalar_prefetch=0,
            grid=(num_tiles,),
            in_specs=[
                pl.BlockSpec((1, tile_n), lambda i: (0, i)),      # x lanes
                pl.BlockSpec((1, tile_n), lambda i: (0, i)),      # y lanes
                pl.BlockSpec((Hp, in_f), lambda i: (0, 0)),       # w1 (resident)
                pl.BlockSpec((Hp, 1), lambda i: (0, 0)),          # b1
                pl.BlockSpec((Hp, Hp), lambda i: (0, 0)),         # w2
                pl.BlockSpec((Hp, 1), lambda i: (0, 0)),          # b2
                pl.BlockSpec((Op, Hp), lambda i: (0, 0)),         # w3
                pl.BlockSpec((Op, 1), lambda i: (0, 0)),          # b3
            ],
            out_specs=pl.BlockSpec((Op, tile_n), lambda i: (0, i)),  # lane-dense output
        ),
        compiler_params=pltpu.CompilerParams(dimension_semantics=("parallel",)),
    )(xr, yr, prep["w1"], prep["b1"], prep["w2"], prep["b2"], prep["w3"], prep["b3"])

    # Strip padding and return in the module's (N, output_size) orientation.
    return out[:out_f, :N].T


def init_params(key, input_size, hidden_size, output_size):
    # Deterministic synthetic init mimicking nn.Linear's U(-1/sqrt(fan_in), 1/sqrt(fan_in)).
    ks = jax.random.split(key, 6)

    def u(k, shape, fan_in):
        bound = 1.0 / jnp.sqrt(fan_in)
        return jax.random.uniform(k, shape, jnp.float32, -bound, bound)

    return {
        "w1": u(ks[0], (hidden_size, input_size), input_size),
        "b1": u(ks[1], (hidden_size,), input_size),
        "w2": u(ks[2], (hidden_size, hidden_size), hidden_size),
        "b2": u(ks[3], (hidden_size,), hidden_size),
        "w3": u(ks[4], (output_size, hidden_size), hidden_size),
        "b3": u(ks[5], (output_size,), hidden_size),
    }


def mlp_ref(x, y, params):
    xy = jnp.concatenate([x.reshape(-1, 1), y.reshape(-1, 1)], axis=1)
    h = jnp.maximum(xy @ params["w1"].T + params["b1"], 0.0)
    h = jnp.maximum(h @ params["w2"].T + params["b2"], 0.0)
    return h @ params["w3"].T + params["b3"]


if __name__ == "__main__":
    key = jax.random.PRNGKey(0)
    k_x, k_y, k_p = jax.random.split(key, 3)

    # forward implies: x, y any shape -> flattened to (N, 1); input_size must be 2.
    input_size, hidden_size, output_size = 2, 32, 4
    x = jax.random.normal(k_x, (8, 16), jnp.float32)   # N = 128 samples
    y = jax.random.normal(k_y, (8, 16), jnp.float32)

    params = init_params(k_p, input_size, hidden_size, output_size)
    prep = prepare_params(params)            # one-time layout prep (pad only, no transpose)

    out = mlp_forward(x, y, prep)
    out = jax.block_until_ready(out)

    ref = mlp_ref(x, y, params)
    assert out.shape == (128, output_size)
    assert jnp.allclose(out, ref, atol=1e-5, rtol=1e-5)

    print("KERNEL_OK")
</pallas_src>

<mosaic_0001>
module attributes {stable_mosaic.version = 11 : i64} {
  func.func @mlp_kernel(%arg0: i32, %arg1: memref<1x128xf32, #tpu.memory_space<vmem>>, %arg2: memref<1x128xf32, #tpu.memory_space<vmem>>, %arg3: memref<32x2xf32, #tpu.memory_space<vmem>>, %arg4: memref<32x1xf32, #tpu.memory_space<vmem>>, %arg5: memref<32x32xf32, #tpu.memory_space<vmem>>, %arg6: memref<32x1xf32, #tpu.memory_space<vmem>>, %arg7: memref<8x32xf32, #tpu.memory_space<vmem>>, %arg8: memref<8x1xf32, #tpu.memory_space<vmem>>, %arg9: memref<8x128xf32, #tpu.memory_space<vmem>>) attributes {dimension_semantics = [#tpu.dimension_semantics<parallel>], iteration_bounds = array<i64: 1>, scalar_prefetch = 0 : i64, scratch_operands = 0 : i64, tpu.core_type = #tpu.core_type<tc>, window_params = [{transform_indices = @transform_0, window_bounds = array<i64: 1, 128>}, {transform_indices = @transform_1, window_bounds = array<i64: 1, 128>}, {pipeline_mode = #tpu.pipeline_mode<synchronous>, transform_indices = @transform_2, window_bounds = array<i64: 32, 2>}, {pipeline_mode = #tpu.pipeline_mode<synchronous>, transform_indices = @transform_3, window_bounds = array<i64: 32, 1>}, {pipeline_mode = #tpu.pipeline_mode<synchronous>, transform_indices = @transform_4, window_bounds = array<i64: 32, 32>}, {pipeline_mode = #tpu.pipeline_mode<synchronous>, transform_indices = @transform_5, window_bounds = array<i64: 32, 1>}, {pipeline_mode = #tpu.pipeline_mode<synchronous>, transform_indices = @transform_6, window_bounds = array<i64: 8, 32>}, {pipeline_mode = #tpu.pipeline_mode<synchronous>, transform_indices = @transform_7, window_bounds = array<i64: 8, 1>}, {transform_indices = @transform_8, window_bounds = array<i64: 8, 128>}]} {
    %c0 = arith.constant 0 : index
    %c0_0 = arith.constant 0 : index
    %0 = vector.load %arg3[%c0, %c0_0] : memref<32x2xf32, #tpu.memory_space<vmem>>, vector<32x1xf32>
    %c0_1 = arith.constant 0 : index
    %c0_2 = arith.constant 0 : index
    %1 = vector.load %arg1[%c0_1, %c0_2] : memref<1x128xf32, #tpu.memory_space<vmem>>, vector<1x128xf32>
    %2 = vector.broadcast %0 : vector<32x1xf32> to vector<32x128xf32>
    %3 = vector.broadcast %1 : vector<1x128xf32> to vector<32x128xf32>
    %4 = arith.mulf %2, %3 : vector<32x128xf32>
    %c0_3 = arith.constant 0 : index
    %c1 = arith.constant 1 : index
    %5 = vector.load %arg3[%c0_3, %c1] : memref<32x2xf32, #tpu.memory_space<vmem>>, vector<32x1xf32>
    %c0_4 = arith.constant 0 : index
    %c0_5 = arith.constant 0 : index
    %6 = vector.load %arg2[%c0_4, %c0_5] : memref<1x128xf32, #tpu.memory_space<vmem>>, vector<1x128xf32>
    %7 = vector.broadcast %5 : vector<32x1xf32> to vector<32x128xf32>
    %8 = vector.broadcast %6 : vector<1x128xf32> to vector<32x128xf32>
    %9 = arith.mulf %7, %8 : vector<32x128xf32>
    %10 = arith.addf %4, %9 : vector<32x128xf32>
    %c0_6 = arith.constant 0 : index
    %c0_7 = arith.constant 0 : index
    %11 = vector.load %arg4[%c0_6, %c0_7] : memref<32x1xf32, #tpu.memory_space<vmem>>, vector<32x1xf32>
    %12 = vector.broadcast %11 : vector<32x1xf32> to vector<32x128xf32>
    %13 = arith.addf %10, %12 : vector<32x128xf32>
    %cst = arith.constant 0.000000e+00 : f32
    %14 = vector.broadcast %cst : f32 to vector<32x128xf32>
    %15 = arith.maximumf %13, %14 : vector<32x128xf32>
    %c0_8 = arith.constant 0 : index
    %c0_9 = arith.constant 0 : index
    %16 = vector.load %arg5[%c0_8, %c0_9] : memref<32x32xf32, #tpu.memory_space<vmem>>, vector<32x32xf32>
    %cst_10 = arith.constant dense<0.000000e+00> : vector<32x128xf32>
    %17 = tpu.matmul %16, %15, %cst_10 {dimension_numbers = #tpu.dot_dimension_numbers<[1], [0], [0], [1], [0, 0, 1, 1], [], []>} : vector<32x32xf32>, vector<32x128xf32>, vector<32x128xf32> -> vector<32x128xf32>
    %c0_11 = arith.constant 0 : index
    %c0_12 = arith.constant 0 : index
    %18 = vector.load %arg6[%c0_11, %c0_12] : memref<32x1xf32, #tpu.memory_space<vmem>>, vector<32x1xf32>
    %19 = vector.broadcast %18 : vector<32x1xf32> to vector<32x128xf32>
    %20 = arith.addf %17, %19 : vector<32x128xf32>
    %cst_13 = arith.constant 0.000000e+00 : f32
    %21 = vector.broadcast %cst_13 : f32 to vector<32x128xf32>
    %22 = arith.maximumf %20, %21 : vector<32x128xf32>
    %c0_14 = arith.constant 0 : index
    %c0_15 = arith.constant 0 : index
    %23 = vector.load %arg7[%c0_14, %c0_15] : memref<8x32xf32, #tpu.memory_space<vmem>>, vector<8x32xf32>
    %cst_16 = arith.constant dense<0.000000e+00> : vector<8x128xf32>
    %24 = tpu.matmul %23, %22, %cst_16 {dimension_numbers = #tpu.dot_dimension_numbers<[1], [0], [0], [1], [0, 0, 1, 1], [], []>} : vector<8x32xf32>, vector<32x128xf32>, vector<8x128xf32> -> vector<8x128xf32>
    %c0_17 = arith.constant 0 : index
    %c0_18 = arith.constant 0 : index
    %25 = vector.load %arg8[%c0_17, %c0_18] : memref<8x1xf32, #tpu.memory_space<vmem>>, vector<8x1xf32>
    %26 = vector.broadcast %25 : vector<8x1xf32> to vector<8x128xf32>
    %27 = arith.addf %24, %26 : vector<8x128xf32>
    %c0_19 = arith.constant 0 : index
    %c0_20 = arith.constant 0 : index
    %28 = vector.load %arg9[%c0_19, %c0_20] : memref<8x128xf32, #tpu.memory_space<vmem>>, vector<8x128xf32>
    tpu.vector_store %arg9[%c0_19, %c0_20], %27 {strides = array<i32>} : memref<8x128xf32, #tpu.memory_space<vmem>>, vector<8x128xf32>,
    return
  }
  func.func @transform_0(%arg0: i32) -> (i32, i32) {
    %c0_i32 = arith.constant 0 : i32
    %c0_i32_0 = arith.constant 0 : i32
    return %c0_i32, %arg0 : i32, i32
  }
  func.func @transform_1(%arg0: i32) -> (i32, i32) {
    %c0_i32 = arith.constant 0 : i32
    %c0_i32_0 = arith.constant 0 : i32
    return %c0_i32, %arg0 : i32, i32
  }
  func.func @transform_2(%arg0: i32) -> (i32, i32) {
    %c0_i32 = arith.constant 0 : i32
    %c0_i32_0 = arith.constant 0 : i32
    %c0_i32_1 = arith.constant 0 : i32
    return %c0_i32, %c0_i32_0 : i32, i32
  }
  func.func @transform_3(%arg0: i32) -> (i32, i32) {
    %c0_i32 = arith.constant 0 : i32
    %c0_i32_0 = arith.constant 0 : i32
    %c0_i32_1 = arith.constant 0 : i32
    return %c0_i32, %c0_i32_0 : i32, i32
  }
  func.func @transform_4(%arg0: i32) -> (i32, i32) {
    %c0_i32 = arith.constant 0 : i32
    %c0_i32_0 = arith.constant 0 : i32
    %c0_i32_1 = arith.constant 0 : i32
    return %c0_i32, %c0_i32_0 : i32, i32
  }
  func.func @transform_5(%arg0: i32) -> (i32, i32) {
    %c0_i32 = arith.constant 0 : i32
    %c0_i32_0 = arith.constant 0 : i32
    %c0_i32_1 = arith.constant 0 : i32
    return %c0_i32, %c0_i32_0 : i32, i32
  }
  func.func @transform_6(%arg0: i32) -> (i32, i32) {
    %c0_i32 = arith.constant 0 : i32
    %c0_i32_0 = arith.constant 0 : i32
    %c0_i32_1 = arith.constant 0 : i32
    return %c0_i32, %c0_i32_0 : i32, i32
  }
  func.func @transform_7(%arg0: i32) -> (i32, i32) {
    %c0_i32 = arith.constant 0 : i32
    %c0_i32_0 = arith.constant 0 : i32
    %c0_i32_1 = arith.constant 0 : i32
    return %c0_i32, %c0_i32_0 : i32, i32
  }
  func.func @transform_8(%arg0: i32) -> (i32, i32) {
    %c0_i32 = arith.constant 0 : i32
    %c0_i32_0 = arith.constant 0 : i32
    return %c0_i32, %arg0 : i32, i32
  }
}

</mosaic_0001>

<llo_original>
// kernel: tpu_custom_call.1
$region0: #{tpu_custom_call.1}
  #allocation0 [shape = 'u32[]', space=smem, size = 0x4, offset = 0x4, fixed_abs, tag = 'smem constant byte address 0x4 - core index']
  #allocation1 [shape = 'u32[144,128]{1,0:T(1,128)}', space=vmem, size = 0x12000, scoped, tag = 'internal scratch']
  %s0 = inlined_call_operand.vmem [shape: f32[1,128], index: 0, kind: input, shape index: {}]
  %s1 = inlined_call_operand.vmem [shape: f32[1,128], index: 1, kind: input, shape index: {}]
  %s2 = inlined_call_operand.vmem [shape: f32[32,2], index: 2, kind: input, shape index: {}]
  %s3 = inlined_call_operand.vmem [shape: f32[32,1], index: 3, kind: input, shape index: {}]
  %s4 = inlined_call_operand.vmem [shape: f32[32,32], index: 4, kind: input, shape index: {}]
  %s5 = inlined_call_operand.vmem [shape: f32[32,1], index: 5, kind: input, shape index: {}]
  %s6 = inlined_call_operand.vmem [shape: f32[8,32], index: 6, kind: input, shape index: {}]
  %s7 = inlined_call_operand.vmem [shape: f32[8,1], index: 7, kind: input, shape index: {}]
  %s8 = inlined_call_operand.hbm [shape: f32[8,128], index: 8, kind: output, shape index: {}]
  %s9 = sld [smem:[#allocation0]]
  $region42: #{tpu_custom_call.1} parent=0
    _
  %s11 = ssub.s32 1, %s9
  %s12 = scalar_select 0, %s11, %s9
  $region1: #{tpu_custom_call.1} parent=0
    #allocation2 [shape = 'u8[4096]{0}', space=vmem, size = 0x1000, scoped, tag = 'output window, operand 0, single buffered']
    #allocation3 [shape = 's32[1]{0}', space=sflag, size = 0x4, scoped, tag = 'scoped memory for tpu_custom_call.1']
    %13 = vsyncpa [#allocation3], 0
    // Predicated region
    $region2: #{tpu_custom_call.1} parent=1 // pred_check
      _
    $region3: #{tpu_custom_call.1} parent=1 // pred_check_branch
      %15 = sbr.rel (0) target = $region5
    $region4: #{tpu_custom_call.1} parent=1 // pred_region
      _
    $region5: #{tpu_custom_call.1} parent=1 // pred_fallthru
      _
    // Predicated region
    $region6: #{tpu_custom_call.1} parent=1 // pred_check
      _
    $region7: #{tpu_custom_call.1} parent=1 // pred_check_branch
      %17 = sbr.rel (0) target = $region9
    $region8: #{tpu_custom_call.1} parent=1 // pred_region
      _
    $region9: #{tpu_custom_call.1} parent=1 // pred_fallthru
      _
    // Predicated region
    $region10: #{tpu_custom_call.1} parent=1 // pred_check
      _
    $region11: #{tpu_custom_call.1} parent=1 // pred_check_branch
      %19 = sbr.rel (0) target = $region13
    $region12: #{tpu_custom_call.1} parent=1 // pred_region
      _
    $region13: #{tpu_custom_call.1} parent=1 // pred_fallthru
      _
    // Predicated region
    $region14: #{tpu_custom_call.1} parent=1 // pred_check
      _
    $region15: #{tpu_custom_call.1} parent=1 // pred_check_branch
      %21 = sbr.rel (0) target = $region17
    $region16: #{tpu_custom_call.1} parent=1 // pred_region
      _
    $region17: #{tpu_custom_call.1} parent=1 // pred_fallthru
      _
    // Predicated region
    $region18: #{tpu_custom_call.1} parent=1 // pred_check
      _
    $region19: #{tpu_custom_call.1} parent=1 // pred_check_branch
      %23 = sbr.rel (0) target = $region21
    $region20: #{tpu_custom_call.1} parent=1 // pred_region
      _
    $region21: #{tpu_custom_call.1} parent=1 // pred_fallthru
      _
    // Predicated region
    $region22: #{tpu_custom_call.1} parent=1 // pred_check
      _
    $region23: #{tpu_custom_call.1} parent=1 // pred_check_branch
      %25 = sbr.rel (0) target = $region25
    $region24: #{tpu_custom_call.1} parent=1 // pred_region
      _
    $region25: #{tpu_custom_call.1} parent=1 // pred_fallthru
      _
    // Predicated region
    $region26: #{tpu_custom_call.1} parent=1 // pred_check
      _
    $region27: #{tpu_custom_call.1} parent=1 // pred_check_branch
      %27 = sbr.rel (0) target = $region29
    $region28: #{tpu_custom_call.1} parent=1 // pred_region
      _
    $region29: #{tpu_custom_call.1} parent=1 // pred_fallthru
      _
    // Predicated region
    $region30: #{tpu_custom_call.1} parent=1 // pred_check
      _
    $region31: #{tpu_custom_call.1} parent=1 // pred_check_branch
      %29 = sbr.rel (0) target = $region33
    $region32: #{tpu_custom_call.1} parent=1 // pred_region
      _
    $region33: #{tpu_custom_call.1} parent=1 // pred_fallthru
      _
    %v30 = vld [vmem:[%s2] sm:$0xff]
    %v31 = vld [vmem:[%s2 + $0x8] sm:$0xff]
    %v32 = vld [vmem:[%s2 + $0x10] sm:$0xff]
    %v33 = vld [vmem:[%s2 + $0x18] sm:$0xff]
    %v34 = vld [vmem:[%s0] sm:$0x1]
    %36 = vset.pattern.permute.xlu0 0
    %37 = vperm.xlu0 %36, %v30
    %v38 = vpop.permute.xlu0 %37
    %41 = vset.pattern.permute.xlu0 0
    %42 = vperm.xlu0 %41, %v31
    %v43 = vpop.permute.xlu0 %42
    %46 = vset.pattern.permute.xlu0 0
    %47 = vperm.xlu0 %46, %v32
    %v48 = vpop.permute.xlu0 %47
    %51 = vset.pattern.permute.xlu0 0
    %52 = vperm.xlu0 %51, %v33
    %v53 = vpop.permute.xlu0 %52
    %v56 = vlaneseq
    %v57 = vshrl.u32 %v56, 7
    %v58 = vsub.s32 0, %v57
    %v59 = vrot.slane %v34, %v58
    %v61 = vmul.f32 %v38, %v59
    %v62 = vmul.f32 %v43, %v59
    %v63 = vmul.f32 %v48, %v59
    %v64 = vmul.f32 %v53, %v59
    %v65 = vld [vmem:[%s1] sm:$0x1]
    %66 = vset.pattern.permute.xlu0 1
    %67 = vperm.xlu0 %66, %v30
    %v68 = vpop.permute.xlu0 %67
    %70 = vset.pattern.permute.xlu0 1
    %71 = vperm.xlu0 %70, %v31
    %v72 = vpop.permute.xlu0 %71
    %74 = vset.pattern.permute.xlu0 1
    %75 = vperm.xlu0 %74, %v32
    %v76 = vpop.permute.xlu0 %75
    %78 = vset.pattern.permute.xlu0 1
    %79 = vperm.xlu0 %78, %v33
    %v80 = vpop.permute.xlu0 %79
    %v83 = vlaneseq
    %v84 = vshrl.u32 %v83, 7
    %v85 = vsub.s32 0, %v84
    %v86 = vrot.slane %v65, %v85
    %v88 = vmul.f32 %v68, %v86
    %v89 = vmul.f32 %v72, %v86
    %v90 = vmul.f32 %v76, %v86
    %v91 = vmul.f32 %v80, %v86
    %v92 = vadd.f32 %v61, %v88
    %v93 = vadd.f32 %v62, %v89
    %v94 = vadd.f32 %v63, %v90
    %v95 = vadd.f32 %v64, %v91
    %v96 = vld [vmem:[%s3] sm:$0xff]
    %v97 = vld [vmem:[%s3 + $0x8] sm:$0xff]
    %v98 = vld [vmem:[%s3 + $0x10] sm:$0xff]
    %v99 = vld [vmem:[%s3 + $0x18] sm:$0xff]
    %101 = vset.pattern.permute.xlu0 0
    %102 = vperm.xlu0 %101, %v96
    %v103 = vpop.permute.xlu0 %102
    %106 = vset.pattern.permute.xlu0 0
    %107 = vperm.xlu0 %106, %v97
    %v108 = vpop.permute.xlu0 %107
    %111 = vset.pattern.permute.xlu0 0
    %112 = vperm.xlu0 %111, %v98
    %v113 = vpop.permute.xlu0 %112
    %116 = vset.pattern.permute.xlu0 0
    %117 = vperm.xlu0 %116, %v99
    %v118 = vpop.permute.xlu0 %117
    %v120 = vadd.f32 %v92, %v103
    %v121 = vadd.f32 %v93, %v108
    %v122 = vadd.f32 %v94, %v113
    %v123 = vadd.f32 %v95, %v118
    %v124 = vmax.f32 %v120, 0.0
    %v125 = vmax.f32 %v121, 0.0
    %v126 = vmax.f32 %v122, 0.0
    %v127 = vmax.f32 %v123, 0.0
    %v128 = vld [vmem:[%s4] sm:$0xff]
    %v129 = vld [vmem:[%s4 + $0x8] sm:$0xff]
    %v130 = vld [vmem:[%s4 + $0x10] sm:$0xff]
    %v131 = vld [vmem:[%s4 + $0x18] sm:$0xff]
    %v132 = vld [vmem:[%s5] sm:$0xff]
    %v133 = vld [vmem:[%s5 + $0x8] sm:$0xff]
    %v134 = vld [vmem:[%s5 + $0x10] sm:$0xff]
    %v135 = vld [vmem:[%s5 + $0x18] sm:$0xff]
    %137 = vset.pattern.permute.xlu0 0
    %138 = vperm.xlu0 %137, %v132
    %v139 = vpop.permute.xlu0 %138
    %142 = vset.pattern.permute.xlu0 0
    %143 = vperm.xlu0 %142, %v133
    %v144 = vpop.permute.xlu0 %143
    %147 = vset.pattern.permute.xlu0 0
    %148 = vperm.xlu0 %147, %v134
    %v149 = vpop.permute.xlu0 %148
    %152 = vset.pattern.permute.xlu0 0
    %153 = vperm.xlu0 %152, %v135
    %v154 = vpop.permute.xlu0 %153
    %vm156 = vcmask 261120
    %v158 = vsel %vm156, %v128, 0
    %v161 = vsel %vm156, %v129, 0
    %v164 = vsel %vm156, %v130, 0
    %v167 = vsel %vm156, %v131, 0
    %169 = vmatprep.subr.mxu0 0.0
    %170 = vmatpush1.msra.mxu0 0.0
    %171 = vmatprep.subr.mxu0 0.0
    %172 = vmatpush1.msra.mxu0 0.0
    %173 = vmatprep.subr.mxu0 0.0
    %174 = vmatpush1.msra.mxu0 0.0
    %175 = vmatprep.subr.mxu0 0.0
    %176 = vmatpush1.msra.mxu0 0.0
    %177 = vmatprep.subr.mxu0 0.0
    %178 = vmatpush1.msra.mxu0 0.0
    %179 = vmatprep.subr.mxu0 0.0
    %180 = vmatpush1.msra.mxu0 0.0
    %181 = vmatprep.subr.mxu0 0.0
    %182 = vmatpush1.msra.mxu0 0.0
    %183 = vmatprep.subr.mxu0 0.0
    %184 = vmatpush1.msra.mxu0 0.0
    %185 = vmatprep.subr.mxu0 0.0
    %186 = vmatpush1.msra.mxu0 0.0
    %187 = vmatprep.subr.mxu0 0.0
    %188 = vmatpush1.msra.mxu0 0.0
    %189 = vmatprep.subr.mxu0 0.0
    %190 = vmatpush1.msra.mxu0 0.0
    %191 = vmatprep.subr.mxu0 0.0
    %192 = vmatpush1.msra.mxu0 0.0
    %193 = vmatprep.subr.mxu0 0.0
    %194 = vmatpush1.msra.mxu0 %v127
    %195 = vmatprep.subr.mxu0 0.0
    %196 = vmatpush1.msra.mxu0 %v126
    %197 = vmatprep.subr.mxu0 0.0
    %198 = vmatpush1.msra.mxu0 %v125
    %199 = vmatprep.subr.mxu0 0.0
    %200 = vmatpush1.msra.mxu0 %v124
    %201 = vmatprep.subr.mxu0 0.0
    %202 = vmatpush2.msra.mxu0 0.0
    %203 = vmatprep.subr.mxu0 0.0
    %204 = vmatpush2.msra.mxu0 0.0
    %205 = vmatprep.subr.mxu0 0.0
    %206 = vmatpush2.msra.mxu0 0.0
    %207 = vmatprep.subr.mxu0 0.0
    %208 = vmatpush2.msra.mxu0 0.0
    %209 = vmatprep.subr.mxu0 0.0
    %210 = vmatpush2.msra.mxu0 0.0
    %211 = vmatprep.subr.mxu0 0.0
    %212 = vmatpush2.msra.mxu0 0.0
    %213 = vmatprep.subr.mxu0 0.0
    %214 = vmatpush2.msra.mxu0 0.0
    %215 = vmatprep.subr.mxu0 0.0
    %216 = vmatpush2.msra.mxu0 0.0
    %217 = vmatprep.subr.mxu0 0.0
    %218 = vmatpush2.msra.mxu0 0.0
    %219 = vmatprep.subr.mxu0 0.0
    %220 = vmatpush2.msra.mxu0 0.0
    %221 = vmatprep.subr.mxu0 0.0
    %222 = vmatpush2.msra.mxu0 0.0
    %223 = vmatprep.subr.mxu0 0.0
    %224 = vmatpush2.msra.mxu0 0.0
    %225 = vmatprep.subr.mxu0 0.0
    %226 = vmatpush2.msra.mxu0 0.0
    %227 = vmatprep.subr.mxu0 0.0
    %228 = vmatpush2.msra.mxu0 0.0
    %229 = vmatprep.subr.mxu0 0.0
    %230 = vmatpush2.msra.mxu0 0.0
    %231 = vmatprep.subr.mxu0 0.0
    %232 = vmatpush2.msra.mxu0 0.0
    %233 = vmatprep.mubr.f32.mxu0 0.0
    %234 = vmatmul.mubr.f32.gmra.mxu0 %v158
    %v235 = vpop.f32.mrf.mxu0
    %v236 = vadd.f32 %v139, %v235
    %v237 = vpop.f32.mrf.mxu0
    %238 = vmatprep.mubr.f32.mxu0 0.0
    %239 = vmatmul.mubr.f32.gmra.mxu0 %v161
    %v240 = vpop.f32.mrf.mxu0
    %v241 = vadd.f32 %v144, %v240
    %v242 = vpop.f32.mrf.mxu0
    %243 = vmatprep.mubr.f32.mxu0 0.0
    %244 = vmatmul.mubr.f32.gmra.mxu0 %v164
    %v245 = vpop.f32.mrf.mxu0
    %v246 = vadd.f32 %v149, %v245
    %v247 = vpop.f32.mrf.mxu0
    %248 = vmatprep.mubr.f32.mxu0 0.0
    %249 = vmatmul.mubr.f32.gmra.mxu0 %v167
    %v250 = vpop.f32.mrf.mxu0
    %v251 = vadd.f32 %v154, %v250
    %v252 = vpop.f32.mrf.mxu0
    %253 = vdwg.mxu0
    %v254 = vmax.f32 %v236, 0.0
    %v255 = vmax.f32 %v241, 0.0
    %v256 = vmax.f32 %v246, 0.0
    %v257 = vmax.f32 %v251, 0.0
    %v258 = vld [vmem:[%s6] sm:$0xff]
    %v259 = vld [vmem:[%s7] sm:$0xff]
    %261 = vset.pattern.permute.xlu0 0
    %262 = vperm.xlu0 %261, %v259
    %v263 = vpop.permute.xlu0 %262
    %v266 = vsel %vm156, %v258, 0
    %268 = vmatprep.subr.mxu0 0.0
    %269 = vmatpush1.msra.mxu0 0.0
    %270 = vmatprep.subr.mxu0 0.0
    %271 = vmatpush1.msra.mxu0 0.0
    %272 = vmatprep.subr.mxu0 0.0
    %273 = vmatpush1.msra.mxu0 0.0
    %274 = vmatprep.subr.mxu0 0.0
    %275 = vmatpush1.msra.mxu0 0.0
    %276 = vmatprep.subr.mxu0 0.0
    %277 = vmatpush1.msra.mxu0 0.0
    %278 = vmatprep.subr.mxu0 0.0
    %279 = vmatpush1.msra.mxu0 0.0
    %280 = vmatprep.subr.mxu0 0.0
    %281 = vmatpush1.msra.mxu0 0.0
    %282 = vmatprep.subr.mxu0 0.0
    %283 = vmatpush1.msra.mxu0 0.0
    %284 = vmatprep.subr.mxu0 0.0
    %285 = vmatpush1.msra.mxu0 0.0
    %286 = vmatprep.subr.mxu0 0.0
    %287 = vmatpush1.msra.mxu0 0.0
    %288 = vmatprep.subr.mxu0 0.0
    %289 = vmatpush1.msra.mxu0 0.0
    %290 = vmatprep.subr.mxu0 0.0
    %291 = vmatpush1.msra.mxu0 0.0
    %292 = vmatprep.subr.mxu0 0.0
    %293 = vmatpush1.msra.mxu0 %v257
    %294 = vmatprep.subr.mxu0 0.0
    %295 = vmatpush1.msra.mxu0 %v256
    %296 = vmatprep.subr.mxu0 0.0
    %297 = vmatpush1.msra.mxu0 %v255
    %298 = vmatprep.subr.mxu0 0.0
    %299 = vmatpush1.msra.mxu0 %v254
    %300 = vmatprep.subr.mxu0 0.0
    %301 = vmatpush2.msra.mxu0 0.0
    %302 = vmatprep.subr.mxu0 0.0
    %303 = vmatpush2.msra.mxu0 0.0
    %304 = vmatprep.subr.mxu0 0.0
    %305 = vmatpush2.msra.mxu0 0.0
    %306 = vmatprep.subr.mxu0 0.0
    %307 = vmatpush2.msra.mxu0 0.0
    %308 = vmatprep.subr.mxu0 0.0
    %309 = vmatpush2.msra.mxu0 0.0
    %310 = vmatprep.subr.mxu0 0.0
    %311 = vmatpush2.msra.mxu0 0.0
    %312 = vmatprep.subr.mxu0 0.0
    %313 = vmatpush2.msra.mxu0 0.0
    %314 = vmatprep.subr.mxu0 0.0
    %315 = vmatpush2.msra.mxu0 0.0
    %316 = vmatprep.subr.mxu0 0.0
    %317 = vmatpush2.msra.mxu0 0.0
    %318 = vmatprep.subr.mxu0 0.0
    %319 = vmatpush2.msra.mxu0 0.0
    %320 = vmatprep.subr.mxu0 0.0
    %321 = vmatpush2.msra.mxu0 0.0
    %322 = vmatprep.subr.mxu0 0.0
    %323 = vmatpush2.msra.mxu0 0.0
    %324 = vmatprep.subr.mxu0 0.0
    %325 = vmatpush2.msra.mxu0 0.0
    %326 = vmatprep.subr.mxu0 0.0
    %327 = vmatpush2.msra.mxu0 0.0
    %328 = vmatprep.subr.mxu0 0.0
    %329 = vmatpush2.msra.mxu0 0.0
    %330 = vmatprep.subr.mxu0 0.0
    %331 = vmatpush2.msra.mxu0 0.0
    %332 = vmatprep.mubr.f32.mxu0 0.0
    %333 = vmatmul.mubr.f32.gmra.mxu0 %v266
    %v334 = vpop.f32.mrf.mxu0
    %v335 = vadd.f32 %v263, %v334
    %v336 = vpop.f32.mrf.mxu0
    %337 = vdwg.mxu0
    %338 = vst [vmem:[#allocation2] sm:$0xff] %v335
    // Predicated region
    $region34: #{tpu_custom_call.1} parent=1 // pred_check
      _
    $region35: #{tpu_custom_call.1} parent=1 // pred_check_branch
      %340 = sbr.rel (0) target = $region37
    $region36: #{tpu_custom_call.1} parent=1 // pred_region
      %s342 = ssub.s32 128, 128
      %343 = vsyncadd [#allocation3], %s342
      %s345 = sshll.u32 [#allocation2], 4
      %s346 = int_to_ptr.vmem [resolvable:$true] %s345
      %348 = dma.vmem_to_hbm [thread:$0]  %s346, 128, %s8, [#allocation3]
    $region37: #{tpu_custom_call.1} parent=1 // pred_fallthru
      _
    // Predicated region
    $region38: #{tpu_custom_call.1} parent=1 // pred_check
      _
    $region39: #{tpu_custom_call.1} parent=1 // pred_check_branch
      %350 = sbr.rel (0) target = $region41
    $region40: #{tpu_custom_call.1} parent=1 // pred_region
      %351 = dma.done [#allocation3], 128
    $region41: #{tpu_custom_call.1} parent=1 // pred_fallthru
      _
    %352 = vsyncpa [#allocation3], 1

</llo_original>
